<compile_context>
chip_gen: v5e
topology: v5e:2x2
jax: 0.10.0
libtpu: 0.0.40
codegen_flags: <defaults>
</compile_context>

<pallas_src>
import functools
import math

import jax
import jax.numpy as jnp
from jax import lax
from jax.experimental import pallas as pl
from jax.experimental.pallas import tpu as pltpu

EPS = 1e-07
LANES = 128
NUM_CORE_SPLITS = 2          # leading "parallel" grid axis (2 TCs on v7x)
MAX_ROWS_PER_BLOCK = 2048    # 2048 x 128 x 4B = 1 MiB per input block


def _cdiv(a, b):
    return -(-a // b)


def _round_up(a, b):
    return _cdiv(a, b) * b


def _nce_kernel(xf_ref, xpos_ref, part_ref, acc_ref, *,
                c: float, n_valid: int, tr: int,
                blocks_per_core: int, need_mask: bool):
    core = pl.program_id(0)           # "parallel" axis (TC shard on v7x)
    step = pl.program_id(1)           # "arbitrary" reduction axis

    @pl.when(step == 0)
    def _init():
        acc_ref[...] = jnp.zeros_like(acc_ref)

    # ---- elementwise accumulate log(x + K*Pn + eps) over this tile ----
    xf = xf_ref[...].astype(jnp.float32)
    log_denom = jnp.log(xf + c)
    if need_mask:
        rows = lax.broadcasted_iota(jnp.int32, xf.shape, 0)
        cols = lax.broadcasted_iota(jnp.int32, xf.shape, 1)
        blk = core * blocks_per_core + step
        gidx = (blk * tr + rows) * LANES + cols
        log_denom = jnp.where(gidx < n_valid, log_denom, 0.0)
    acc_ref[...] = acc_ref[...] + log_denom

    # ---- finalize: single cross-lane reduce + positive term (core 0 only) ----
    @pl.when(step == pl.num_programs(1) - 1)
    def _fin():
        denom_sum = jnp.sum(acc_ref[...])
        xp = xpos_ref[...].astype(jnp.float32)                # (1, B)
        pos_sum = jnp.where(core == 0, jnp.sum(jnp.log(xp)), 0.0)
        total = pos_sum - denom_sum
        part_ref[...] = jnp.zeros_like(part_ref) + total


def nce_criterion(x, targets=None, *, n_lem: int):
    """Pallas implementation of NCECriterion(nLem).forward(x, targets)."""
    del targets  # unused by the reference forward pass
    x = jnp.asarray(x)
    B, K1 = x.shape
    K = K1 - 1
    N = B * K1

    pn = 1.0 / float(n_lem)
    c = float(K) * pn + EPS           # K*Pnt + eps == K*Pns + eps

    # ---- lane-dense flattened layout + tiling (minimal padding) ----
    rows_needed = _cdiv(N, LANES)
    rows_per_core = _cdiv(rows_needed, NUM_CORE_SPLITS)
    bpc = max(1, _cdiv(rows_per_core, MAX_ROWS_PER_BLOCK))   # blocks per core
    tr = _round_up(max(1, _cdiv(rows_per_core, bpc)), 8)     # rows per block
    rows_total = tr * bpc * NUM_CORE_SPLITS
    padded = rows_total * LANES

    x_flat = x.reshape(-1)
    if padded != N:
        # pad with 1.0 so log() stays finite; exactness restored by the mask
        x_flat = jnp.pad(x_flat, (0, padded - N), constant_values=1.0)
    x_flat = x_flat.reshape(rows_total, LANES)
    x_pos = x[:, 0].reshape(1, B)                             # positive column

    kernel = functools.partial(
        _nce_kernel, c=c, n_valid=N, tr=tr,
        blocks_per_core=bpc, need_mask=(padded != N))

    partials = pl.pallas_call(
        kernel,
        out_shape=jax.ShapeDtypeStruct((NUM_CORE_SPLITS, 8, LANES),
                                       jnp.float32),
        grid_spec=pltpu.PrefetchScalarGridSpec(
            num_scalar_prefetch=0,
            grid=(NUM_CORE_SPLITS, bpc),
            in_specs=[
                pl.BlockSpec((tr, LANES), lambda cc, i: (cc * bpc + i, 0)),
                pl.BlockSpec((1, B), lambda cc, i: (0, 0)),
            ],
            out_specs=pl.BlockSpec((1, 8, LANES), lambda cc, i: (cc, 0, 0)),
            scratch_shapes=[pltpu.VMEM((tr, LANES), jnp.float32)],
        ),
        compiler_params=pltpu.CompilerParams(
            dimension_semantics=("parallel", "arbitrary")),
        cost_estimate=pl.CostEstimate(
            flops=4 * padded,
            transcendentals=padded + B,
            bytes_accessed=4 * (padded + B + NUM_CORE_SPLITS * 8 * LANES)),
    )(x_flat, x_pos)

    # combine per-core partials; hoisted constant term B*K*log(K*Pn)
    const = float(B) * float(K) * math.log(float(K) * pn) if K > 0 else 0.0
    total = jnp.sum(partials[:, 0, 0]) + const
    loss = (-total / B).astype(jnp.float32).reshape(1)
    return loss  # torch returns a (1,)-shaped tensor


def _nce_reference(x, n_lem: int):
    """Pure-JAX reference mirroring the PyTorch forward exactly."""
    x = x.astype(jnp.float32)
    B, K1 = x.shape
    K = K1 - 1
    Pn = 1.0 / float(n_lem)
    Pmt = x[:, 0]
    lnPmt = jnp.log(Pmt / (Pmt + K * Pn + EPS))
    Pon_div = x[:, 1:] + K * Pn + EPS
    lnPon = jnp.log((K * Pn) / Pon_div)
    loss = -(jnp.sum(lnPmt) + jnp.sum(lnPon)) / B
    return loss.reshape((1,))


if __name__ == "__main__":
    n_lem = 4096            # memory-bank size (module __init__ arg)
    batch = 8
    K_plus_1 = 33           # 1 positive + K=32 noise samples

    key = jax.random.PRNGKey(0)
    kx, kt = jax.random.split(key)
    # positive-valued "probability" scores, as produced by the NCE average op
    x = jax.random.uniform(kx, (batch, K_plus_1), dtype=jnp.float32,
                           minval=1e-4, maxval=1.0)
    targets = jax.random.randint(kt, (batch,), 0, n_lem)  # unused by forward

    loss = nce_criterion(x, targets, n_lem=n_lem)
    loss = jax.block_until_ready(loss)

    ref = _nce_reference(x, n_lem)
    assert loss.shape == (1,), loss.shape
    assert jnp.allclose(loss, ref, rtol=1e-5, atol=1e-4), (loss, ref)

    print("KERNEL_OK")
</pallas_src>

<mosaic_0001>
module attributes {stable_mosaic.version = 11 : i64} {
  func.func @_nce_kernel(%arg0: i32, %arg1: i32, %arg2: memref<8x128xf32, #tpu.memory_space<vmem>>, %arg3: memref<1x8xf32, #tpu.memory_space<vmem>>, %arg4: memref<1x8x128xf32, #tpu.memory_space<vmem>>, %arg5: memref<8x128xf32, #tpu.memory_space<vmem>>) attributes {dimension_semantics = [#tpu.dimension_semantics<parallel>, #tpu.dimension_semantics<arbitrary>], iteration_bounds = array<i64: 2, 1>, scalar_prefetch = 0 : i64, scratch_operands = 1 : i64, tpu.core_type = #tpu.core_type<tc>, window_params = [{transform_indices = @transform_0, window_bounds = array<i64: 8, 128>}, {pipeline_mode = #tpu.pipeline_mode<synchronous>, transform_indices = @transform_1, window_bounds = array<i64: 1, 8>}, {transform_indices = @transform_2, window_bounds = array<i64: 1, 8, 128>}]} {
    %c0_i32 = arith.constant 0 : i32
    %0 = arith.cmpi eq, %arg1, %c0_i32 : i32
    %1 = arith.extui %0 : i1 to i32
    %c0_i32_0 = arith.constant 0 : i32
    %2 = arith.cmpi ne, %1, %c0_i32_0 : i32
    scf.if %2 {
      %cst_9 = arith.constant 0.000000e+00 : f32
      %27 = vector.broadcast %cst_9 : f32 to vector<8x128xf32>
      %c0_10 = arith.constant 0 : index
      %c0_11 = arith.constant 0 : index
      %28 = vector.load %arg5[%c0_10, %c0_11] : memref<8x128xf32, #tpu.memory_space<vmem>>, vector<8x128xf32>
      tpu.vector_store %arg5[%c0_10, %c0_11], %27 {strides = array<i32>} : memref<8x128xf32, #tpu.memory_space<vmem>>, vector<8x128xf32>,
    } else {
    }
    %c0 = arith.constant 0 : index
    %c0_1 = arith.constant 0 : index
    %3 = vector.load %arg2[%c0, %c0_1] : memref<8x128xf32, #tpu.memory_space<vmem>>, vector<8x128xf32>
    %cst = arith.constant 7.812600e-03 : f32
    %4 = vector.broadcast %cst : f32 to vector<8x128xf32>
    %5 = arith.addf %3, %4 : vector<8x128xf32>
    %6 = math.log %5 : vector<8x128xf32>
    %7 = tpu.iota {dimensions = array<i32: 0>} : vector<8x128xi32>
    %8 = tpu.iota {dimensions = array<i32: 1>} : vector<8x128xi32>
    %c1_i32 = arith.constant 1 : i32
    %9 = arith.muli %arg0, %c1_i32 : i32
    %10 = arith.addi %9, %arg1 : i32
    %c8_i32 = arith.constant 8 : i32
    %11 = arith.muli %10, %c8_i32 : i32
    %12 = vector.broadcast %11 : i32 to vector<8x128xi32>
    %13 = arith.addi %12, %7 : vector<8x128xi32>
    %c128_i32 = arith.constant 128 : i32
    %14 = vector.broadcast %c128_i32 : i32 to vector<8x128xi32>
    %15 = arith.muli %13, %14 : vector<8x128xi32>
    %16 = arith.addi %15, %8 : vector<8x128xi32>
    %c264_i32 = arith.constant 264 : i32
    %17 = vector.broadcast %c264_i32 : i32 to vector<8x128xi32>
    %18 = arith.cmpi slt, %16, %17 : vector<8x128xi32>
    %cst_2 = arith.constant 0.000000e+00 : f32
    %19 = vector.broadcast %cst_2 : f32 to vector<8x128xf32>
    %20 = arith.select %18, %6, %19 : vector<8x128xi1>, vector<8x128xf32>
    %c0_3 = arith.constant 0 : index
    %c0_4 = arith.constant 0 : index
    %21 = vector.load %arg5[%c0_3, %c0_4] : memref<8x128xf32, #tpu.memory_space<vmem>>, vector<8x128xf32>
    %22 = arith.addf %21, %20 : vector<8x128xf32>
    %c0_5 = arith.constant 0 : index
    %c0_6 = arith.constant 0 : index
    %23 = vector.load %arg5[%c0_5, %c0_6] : memref<8x128xf32, #tpu.memory_space<vmem>>, vector<8x128xf32>
    tpu.vector_store %arg5[%c0_5, %c0_6], %22 {strides = array<i32>} : memref<8x128xf32, #tpu.memory_space<vmem>>, vector<8x128xf32>,
    %c0_i32_7 = arith.constant 0 : i32
    %24 = arith.cmpi eq, %arg1, %c0_i32_7 : i32
    %25 = arith.extui %24 : i1 to i32
    %c0_i32_8 = arith.constant 0 : i32
    %26 = arith.cmpi ne, %25, %c0_i32_8 : i32
    scf.if %26 {
      %c0_9 = arith.constant 0 : index
      %c0_10 = arith.constant 0 : index
      %27 = vector.load %arg5[%c0_9, %c0_10] : memref<8x128xf32, #tpu.memory_space<vmem>>, vector<8x128xf32>
      %28 = vector.shape_cast %27 : vector<8x128xf32> to vector<1x8x128xf32>
      %cst_11 = arith.constant dense<0.000000e+00> : vector<1xf32>
      %29 = vector.multi_reduction <add>, %28, %cst_11 [1, 2] : vector<1x8x128xf32> to vector<1xf32>
      %30 = vector.shape_cast %29 : vector<1xf32> to vector<1x1x1xf32>
      %31 = vector.extract %30[0, 0, 0] : f32 from vector<1x1x1xf32>
      %c0_12 = arith.constant 0 : index
      %c0_13 = arith.constant 0 : index
      %32 = vector.load %arg3[%c0_12, %c0_13] : memref<1x8xf32, #tpu.memory_space<vmem>>, vector<1x8xf32>
      %c0_i32_14 = arith.constant 0 : i32
      %33 = arith.cmpi eq, %arg0, %c0_i32_14 : i32
      %34 = math.log %32 : vector<1x8xf32>
      %35 = vector.shape_cast %34 : vector<1x8xf32> to vector<1x1x8xf32>
      %cst_15 = arith.constant dense<0.000000e+00> : vector<1xf32>
      %36 = vector.multi_reduction <add>, %35, %cst_15 [1, 2] : vector<1x1x8xf32> to vector<1xf32>
      %37 = vector.shape_cast %36 : vector<1xf32> to vector<1x1x1xf32>
      %38 = vector.extract %37[0, 0, 0] : f32 from vector<1x1x1xf32>
      %cst_16 = arith.constant 0.000000e+00 : f32
      %39 = arith.select %33, %38, %cst_16 : f32
      %40 = arith.subf %39, %31 : f32
      %cst_17 = arith.constant 0.000000e+00 : f32
      %41 = vector.broadcast %cst_17 : f32 to vector<1x8x128xf32>
      %42 = vector.broadcast %40 : f32 to vector<1x8x128xf32>
      %43 = arith.addf %41, %42 : vector<1x8x128xf32>
      %c0_18 = arith.constant 0 : index
      %c0_19 = arith.constant 0 : index
      %c0_20 = arith.constant 0 : index
      %44 = vector.load %arg4[%c0_18, %c0_19, %c0_20] : memref<1x8x128xf32, #tpu.memory_space<vmem>>, vector<1x8x128xf32>
      tpu.vector_store %arg4[%c0_18, %c0_19, %c0_20], %43 {strides = array<i32>} : memref<1x8x128xf32, #tpu.memory_space<vmem>>, vector<1x8x128xf32>,
    } else {
    }
    return
  }
  func.func @transform_0(%arg0: i32, %arg1: i32) -> (i32, i32) {
    %c1_i32 = arith.constant 1 : i32
    %0 = arith.muli %arg0, %c1_i32 : i32
    %1 = arith.addi %0, %arg1 : i32
    %c0_i32 = arith.constant 0 : i32
    %c0_i32_0 = arith.constant 0 : i32
    return %1, %c0_i32 : i32, i32
  }
  func.func @transform_1(%arg0: i32, %arg1: i32) -> (i32, i32) {
    %c0_i32 = arith.constant 0 : i32
    %c0_i32_0 = arith.constant 0 : i32
    %c0_i32_1 = arith.constant 0 : i32
    return %c0_i32, %c0_i32_0 : i32, i32
  }
  func.func @transform_2(%arg0: i32, %arg1: i32) -> (i32, i32, i32) {
    %c0_i32 = arith.constant 0 : i32
    %c0_i32_0 = arith.constant 0 : i32
    %c0_i32_1 = arith.constant 0 : i32
    return %arg0, %c0_i32, %c0_i32_0 : i32, i32, i32
  }
}

</mosaic_0001>

<llo_original>
// kernel: tpu_custom_call.1
$region0: #{tpu_custom_call.1}
  #allocation0 [shape = 'u32[]', space=smem, size = 0x4, offset = 0x4, fixed_abs, tag = 'smem constant byte address 0x4 - core index']
  #allocation1 [shape = 'u32[72,128]{1,0:T(1,128)}', space=vmem, size = 0x9000, scoped, tag = 'internal scratch']
  #allocation2 [shape = 'f32[8,128]{1,0:T(8,128)}', space=vmem, size = 0x1000, scoped, tag = 'scratch operand']
  %s0 = inlined_call_operand.hbm [shape: f32[16,128], index: 0, kind: input, shape index: {}]
  %s1 = inlined_call_operand.hbm [shape: f32[1,8], index: 1, kind: input, shape index: {}]
  %s2 = inlined_call_operand.hbm [shape: f32[2,8,128], index: 2, kind: output, shape index: {}]
  %s3 = sld [smem:[#allocation0]]
  $region57: #{tpu_custom_call.1} parent=0
    _
  %s5 = ssub.s32 1, %s3
  %s6 = scalar_select 0, %s5, %s3
  $region1: #{tpu_custom_call.1} parent=0
    #allocation3 [shape = 'u8[8192]{0}', space=vmem, size = 0x2000, scoped, tag = 'input window, operand 0']
    #allocation4 [shape = 's32[2]{0}', space=sflag, size = 0x8, scoped, tag = 'scoped memory for tpu_custom_call.1']
    #allocation5 [shape = 's32[2]{0}', space=sflag, size = 0x8, scoped, tag = 'scoped memory for tpu_custom_call.1']
    #allocation6 [shape = 'u8[512]{0}', space=vmem, size = 0x400, scoped, tag = 'input window, operand 1, single buffered']
    #allocation7 [shape = 's32[1]{0}', space=sflag, size = 0x4, scoped, tag = 'scoped memory for tpu_custom_call.1']
    #allocation8 [shape = 'u8[8192]{0}', space=vmem, size = 0x2000, scoped, tag = 'output window, operand 0']
    %7 = vsyncpa [#allocation4], 0
    %s8 = scalar_lea.sflag [#allocation4], 1
    %9 = vsyncpa %s8, 0
    %10 = vsyncpa [#allocation7], 0
    %11 = vsyncpa [#allocation5], 0
    %s12 = scalar_lea.sflag [#allocation5], 1
    %13 = vsyncpa %s12, 0
    loop: start=0, step=1, limit=4
    $region2: #{tpu_custom_call.1} parent=1 // loop_pre_header
      _
    $region3: #{tpu_custom_call.1} parent=1 // loop_header
      %s15 = sphi 0, %s19
      %p16 = scmp.ge.s32.totalorder %s15, 4
      %s22 = sphi 0, %s34
      %s23 = sphi 0, %s30
      %s24 = sphi 0, %s22
      %s25 = sphi 0, %s23
      %s26 = sphi 0, %s24
      %s27 = sphi 0, %s25
      %s39 = sphi 0, %s41
      %s42 = sphi 0, %s39
      %s43 = sphi 0, %s42
      %s59 = sphi 0, %s43
      %s63 = sphi 0, %s63
      %s65 = sphi 0, %s63
      %s66 = sphi 0, %s65
      %s80 = sphi 0, %s66
      %s86 = sphi 0, %s88
      %s89 = sphi 0, %s86
      %s90 = sphi 0, %s89
      %s106 = sphi 0, %s90
    $region4: #{tpu_custom_call.1} parent=1 // loop_header_branch
      %18 = sbr.rel (%p16) target = $region8
    $region5: #{tpu_custom_call.1} parent=1 // loop_body
      %s20 = ssub.s32 %s15, 1
      %s21 = ssub.s32 %s15, 2
      %s28 = sadd.s32 1, %s23
      %p29 = scmp.ge.s32.totalorder %s28, 1
      %s30 = scalar_select %p29, 0, %s28
      %s31 = sadd.s32 1, %s22
      %s32 = scalar_select %p29, %s31, %s22
      %p33 = scmp.ge.s32.totalorder %s32, 2
      %s34 = scalar_select %p33, 0, %s32
      %s35 = sadd.s32 %s22, %s23
      %s36 = sadd.s32 %s34, %s30
      %s37 = ssub.s32 %s35, %s36
      %p38 = scmp.eq.s32.totalorder %s37, 0
      %s40 = sadd.s32 %s39, 1
      %s41 = scalar_select %p38, %s39, %s40
      %p44 = pneg %p38
      %p45 = scmp.eq.s32.totalorder %s15, 1
      %p46 = por %p44, %p45
      %p47 = scmp.ne.s32.totalorder %s39, %s42
      %p48 = scmp.eq.s32.totalorder %s15, 0
      %p49 = por %p47, %p48
      %p50 = scmp.ne.s32.totalorder %s39, %s42
      %p51 = scmp.eq.s32.totalorder %s20, 1
      %p52 = por %p50, %p51
      %p53 = scmp.ne.s32.totalorder %s42, %s43
      %p54 = scmp.eq.s32.totalorder %s20, 0
      %p55 = por %p53, %p54
      %p56 = scmp.ne.s32.totalorder %s42, %s43
      %p57 = scmp.eq.s32.totalorder %s21, 1
      %p58 = por %p56, %p57
      %p60 = scmp.ne.s32.totalorder %s43, %s59
      %p61 = scmp.eq.s32.totalorder %s21, 0
      %p62 = por %p60, %p61
      %s64 = sadd.s32 %s63, 1
      %p67 = scmp.eq.s32.totalorder %s15, 1
      %p68 = scmp.ne.s32.totalorder %s63, %s65
      %p69 = scmp.eq.s32.totalorder %s15, 0
      %p70 = por %p68, %p69
      %p71 = scmp.ne.s32.totalorder %s63, %s65
      %p72 = scmp.eq.s32.totalorder %s20, 1
      %p73 = por %p71, %p72
      %p74 = scmp.ne.s32.totalorder %s65, %s66
      %p75 = scmp.eq.s32.totalorder %s20, 0
      %p76 = por %p74, %p75
      %p77 = scmp.ne.s32.totalorder %s65, %s66
      %p78 = scmp.eq.s32.totalorder %s21, 1
      %p79 = por %p77, %p78
      %p81 = scmp.ne.s32.totalorder %s66, %s80
      %p82 = scmp.eq.s32.totalorder %s21, 0
      %p83 = por %p81, %p82
      %s84 = ssub.s32 %s22, %s34
      %p85 = scmp.eq.s32.totalorder %s84, 0
      %s87 = sadd.s32 %s86, 1
      %s88 = scalar_select %p85, %s86, %s87
      %p91 = pneg %p85
      %p92 = scmp.eq.s32.totalorder %s15, 1
      %p93 = por %p91, %p92
      %p94 = scmp.ne.s32.totalorder %s86, %s89
      %p95 = scmp.eq.s32.totalorder %s15, 0
      %p96 = por %p94, %p95
      %p97 = scmp.ne.s32.totalorder %s86, %s89
      %p98 = scmp.eq.s32.totalorder %s20, 1
      %p99 = por %p97, %p98
      %p100 = scmp.ne.s32.totalorder %s89, %s90
      %p101 = scmp.eq.s32.totalorder %s20, 0
      %p102 = por %p100, %p101
      %p103 = scmp.ne.s32.totalorder %s89, %s90
      %p104 = scmp.eq.s32.totalorder %s21, 1
      %p105 = por %p103, %p104
      %p107 = scmp.ne.s32.totalorder %s90, %s106
      %p108 = scmp.eq.s32.totalorder %s21, 0
      %p109 = por %p107, %p108
      %p110 = scmp.le.s32.totalorder 1, %s15
      %p111 = scmp.lt.s32.totalorder %s15, 3
      %p112 = pnand %p110, %p111
      %p113 = pneg %p112
      // Predicated region
      $region9: #{tpu_custom_call.1} parent=5 // pred_check
        _
      $region10: #{tpu_custom_call.1} parent=5 // pred_check_branch
        %115 = sbr.rel (%p112) target = $region12
      $region11: #{tpu_custom_call.1} parent=5 // pred_region
        %s116 = ssub.s32 %s15, 1
        // Predicated region
        $region13: #{tpu_custom_call.1} parent=11 // pred_check
          %p117 = pneg %p76
        $region14: #{tpu_custom_call.1} parent=11 // pred_check_branch
          %119 = sbr.rel (%p117) target = $region16
        $region15: #{tpu_custom_call.1} parent=11 // pred_region
          %121 = vsyncadd [#allocation7], 0
          %s123 = sshll.u32 %s1, 4
          %s124 = int_to_ptr.hbm [resolvable:$true] %s123
          %s125 = sshll.u32 [#allocation6], 4
          %s126 = int_to_ptr.vmem [resolvable:$true] %s125
          %128 = dma.hbm_to_vmem [thread:$0]  %s124, 16, %s126, [#allocation7]
        $region16: #{tpu_custom_call.1} parent=11 // pred_fallthru
          _
      $region12: #{tpu_custom_call.1} parent=5 // pred_fallthru
        _
      %p129 = scmp.lt.s32.totalorder %s15, 2
      // Predicated region
      $region17: #{tpu_custom_call.1} parent=5 // pred_check
        %p130 = pneg %p129
      $region18: #{tpu_custom_call.1} parent=5 // pred_check_branch
        %132 = sbr.rel (%p130) target = $region20
      $region19: #{tpu_custom_call.1} parent=5 // pred_region
        // Predicated region
        $region21: #{tpu_custom_call.1} parent=19 // pred_check
          %p133 = pneg %p49
        $region22: #{tpu_custom_call.1} parent=19 // pred_check_branch
          %135 = sbr.rel (%p133) target = $region24
        $region23: #{tpu_custom_call.1} parent=19 // pred_region
          %s136 = sand.u32 %s39, 1
          %s137 = scalar_lea.sflag [#allocation4], %s136
          %s138 = sand.u32 %s39, 1
          %s139 = smul.addr %s138, 8
          %s140 = scalar_lea.vmem [#allocation3], %s139
          %s141 = sadd.s32 %s22, %s23
          %143 = vsyncadd %s137, 0
          %s144 = smul.addr %s141, 8
          %s145 = scalar_lea.hbm %s0, %s144
          %s147 = sshll.u32 %s145, 4
          %s148 = int_to_ptr.hbm [resolvable:$true] %s147
          %s149 = sshll.u32 %s140, 4
          %s150 = int_to_ptr.vmem [resolvable:$true] %s149
          %152 = dma.hbm_to_vmem [thread:$0]  %s148, 128, %s150, %s137
        $region24: #{tpu_custom_call.1} parent=19 // pred_fallthru
          _
      $region20: #{tpu_custom_call.1} parent=5 // pred_fallthru
        _
      %p153 = scmp.le.s32.totalorder 1, %s15
      %p154 = scmp.lt.s32.totalorder %s15, 3
      %p155 = pnand %p153, %p154
      %p156 = pneg %p155
      // Predicated region
      $region25: #{tpu_custom_call.1} parent=5 // pred_check
        _
      $region26: #{tpu_custom_call.1} parent=5 // pred_check_branch
        %158 = sbr.rel (%p155) target = $region28
      $region27: #{tpu_custom_call.1} parent=5 // pred_region
        %s159 = ssub.s32 %s15, 1
        %s160 = sand.u32 %s42, 1
        %s161 = scalar_lea.sflag [#allocation4], %s160
        %s162 = sand.u32 %s42, 1
        %s163 = smul.addr %s162, 8
        %s164 = scalar_lea.vmem [#allocation3], %s163
        // Predicated region
        $region29: #{tpu_custom_call.1} parent=27 // pred_check
          %p165 = pneg %p55
        $region30: #{tpu_custom_call.1} parent=27 // pred_check_branch
          %167 = sbr.rel (%p165) target = $region32
        $region31: #{tpu_custom_call.1} parent=27 // pred_region
          %169 = dma.done %s161, 128
        $region32: #{tpu_custom_call.1} parent=27 // pred_fallthru
          _
        // Predicated region
        $region33: #{tpu_custom_call.1} parent=27 // pred_check
          %p170 = pneg %p76
        $region34: #{tpu_custom_call.1} parent=27 // pred_check_branch
          %172 = sbr.rel (%p170) target = $region36
        $region35: #{tpu_custom_call.1} parent=27 // pred_region
          %174 = dma.done [#allocation7], 16
        $region36: #{tpu_custom_call.1} parent=27 // pred_fallthru
          _
        %s175 = sand.u32 %s42, 1
        %s176 = scalar_lea.sflag [#allocation4], %s175
        %s177 = sand.u32 %s42, 1
        %s178 = smul.addr %s177, 8
        %s179 = scalar_lea.vmem [#allocation3], %s178
        %p180 = pneg %p55
        %p181 = pneg %p52
        %p182 = pneg %p76
        %p183 = pneg %p73
        %p184 = pneg %p102
        %p185 = pneg %p99
        %s186 = sand.u32 %s89, 1
        %s187 = scalar_lea.sflag [#allocation5], %s186
        %s188 = sand.u32 %s89, 1
        %s189 = smul.addr %s188, 8
        %s190 = scalar_lea.vmem [#allocation8], %s189
        %s191 = sadd.s32 %s24, %s25
        %p192 = scmp.eq.s32.totalorder %s25, 0
        // Predicated region
        $region37: #{tpu_custom_call.1} parent=27 // pred_check
          %p193 = pneg %p192
        $region38: #{tpu_custom_call.1} parent=27 // pred_check_branch
          %195 = sbr.rel (%p193) target = $region40
        $region39: #{tpu_custom_call.1} parent=27 // pred_region
          %196 = vst [vmem:[#allocation2] sm:$0xff] 0.0
        $region40: #{tpu_custom_call.1} parent=27 // pred_fallthru
          _
        %v197 = vld [vmem:[%s164] sm:$0xff]
        %v198 = vadd.f32 %v197, 0.0078126
        %v199 = vlog2.pop %v198
        %v200 = vmul.f32 %v199, 0.6931472
        %v201 = vlaneseq
        %v202 = vshrl.u32 %v201, 7
        %v203 = vlaneseq
        %v204 = vand.u32 %v203, 127
        %s205 = sadd.s32 %s24, %s25
        %s206 = smul.u32 %s205, 8
        %v207 = vstv %s206
        %v208 = vadd.s32 %v207, %v202
        %v209 = vmul.u32 %v208, 128
        %v210 = vadd.s32 %v209, %v204
        %vm211 = vcmp.lt.s32.totalorder %v210, 264
        %v212 = vsel %vm211, %v200, 0.0
        %v213 = vld [vmem:[#allocation2] sm:$0xff]
        %v214 = vadd.f32 %v213, %v212
        %215 = vst [vmem:[#allocation2] sm:$0xff] %v214
        // Predicated region
        $region41: #{tpu_custom_call.1} parent=27 // pred_check
          %p216 = pneg %p192
        $region42: #{tpu_custom_call.1} parent=27 // pred_check_branch
          %218 = sbr.rel (%p216) target = $region44
        $region43: #{tpu_custom_call.1} parent=27 // pred_region
          %v219 = vld [vmem:[#allocation2] sm:$0xff]
          %220 = vadd.xlane.f32.xlu0 %v219
          %v221 = vpop.xlane.xlu0 %220
          %v222 = vrot.slane %v221, 4
          %v223 = vadd.f32 %v221, %v222
          %v224 = vrot.slane %v223, 2
          %v225 = vadd.f32 %v223, %v224
          %v226 = vrot.slane %v225, 1
          %v227 = vadd.f32 %v225, %v226
          %s228 = vtos %v227
          %v229 = vld [vmem:[#allocation6] sm:$0x1]
          %p230 = scmp.eq.s32.totalorder %s24, 0
          %v231 = vlog2.pop %v229
          %v232 = vmul.f32 %v231, 0.6931472
          %vm233 = vcmask 57344
          %v234 = vsel %vm233, %v232, 0.0
          %235 = vadd.xlane.f32.xlu0 %v234
          %v236 = vpop.xlane.xlu0 %235
          %v237 = vrot.slane %v236, 4
          %v238 = vadd.f32 %v236, %v237
          %v239 = vrot.slane %v238, 2
          %v240 = vadd.f32 %v238, %v239
          %v241 = vrot.slane %v240, 1
          %v242 = vadd.f32 %v240, %v241
          %s243 = vtos %v242
          %s244 = scalar_select %p230, %s243, 0.0
          %s245 = ssub.f32 %s244, %s228
          %v246 = vstv %s245
          %v247 = vadd.f32 %v246, 0.0
          %248 = vst [vmem:[%s190] sm:$0xff] %v247
        $region44: #{tpu_custom_call.1} parent=27 // pred_fallthru
          _
        %s249 = sand.u32 %s89, 1
        %s250 = scalar_lea.sflag [#allocation5], %s249
        %s251 = sand.u32 %s89, 1
        %s252 = smul.addr %s251, 8
        %s253 = scalar_lea.vmem [#allocation8], %s252
        // Predicated region
        $region45: #{tpu_custom_call.1} parent=27 // pred_check
          %p254 = pneg %p99
        $region46: #{tpu_custom_call.1} parent=27 // pred_check_branch
          %256 = sbr.rel (%p254) target = $region48
        $region47: #{tpu_custom_call.1} parent=27 // pred_region
          %258 = vsyncadd %s250, 0
          %s259 = smul.addr %s24, 8
          %s260 = scalar_lea.hbm %s2, %s259
          %s262 = sshll.u32 %s253, 4
          %s263 = int_to_ptr.vmem [resolvable:$true] %s262
          %s264 = sshll.u32 %s260, 4
          %s265 = int_to_ptr.hbm [resolvable:$true] %s264
          %267 = dma.vmem_to_hbm [thread:$0]  %s263, 128, %s265, %s250
        $region48: #{tpu_custom_call.1} parent=27 // pred_fallthru
          _
      $region28: #{tpu_custom_call.1} parent=5 // pred_fallthru
        _
      %p268 = scmp.le.s32.totalorder 2, %s15
      // Predicated region
      $region49: #{tpu_custom_call.1} parent=5 // pred_check
        %p269 = pneg %p268
      $region50: #{tpu_custom_call.1} parent=5 // pred_check_branch
        %271 = sbr.rel (%p269) target = $region52
      $region51: #{tpu_custom_call.1} parent=5 // pred_region
        %s272 = ssub.s32 %s15, 2
        // Predicated region
        $region53: #{tpu_custom_call.1} parent=51 // pred_check
          %p273 = pneg %p105
        $region54: #{tpu_custom_call.1} parent=51 // pred_check_branch
          %275 = sbr.rel (%p273) target = $region56
        $region55: #{tpu_custom_call.1} parent=51 // pred_region
          %s276 = sand.u32 %s90, 1
          %s277 = scalar_lea.sflag [#allocation5], %s276
          %s278 = sand.u32 %s90, 1
          %s279 = smul.addr %s278, 8
          %s280 = scalar_lea.vmem [#allocation8], %s279
          %282 = dma.done %s277, 128
        $region56: #{tpu_custom_call.1} parent=51 // pred_fallthru
          _
      $region52: #{tpu_custom_call.1} parent=5 // pred_fallthru
        _
    $region6: #{tpu_custom_call.1} parent=1 // loop_footer
      %s19 = sadd.s32 1, %s15
    $region7: #{tpu_custom_call.1} parent=1 // loop_footer_branch
      %14 = sbr.rel target = $region3
    $region8: #{tpu_custom_call.1} parent=1 // loop_exit
      _
    %283 = vsyncpa [#allocation4], 1
    %s284 = scalar_lea.sflag [#allocation4], 1
    %285 = vsyncpa %s284, 1
    %286 = vsyncpa [#allocation7], 1
    %287 = vsyncpa [#allocation5], 1
    %s288 = scalar_lea.sflag [#allocation5], 1
    %289 = vsyncpa %s288, 1

</llo_original>
